<compile_context>
chip_gen: v5e
topology: v5e:2x2
jax: 0.10.0
libtpu: 0.0.40
codegen_flags: <defaults>
</compile_context>

<pallas_src>
import functools

import jax
import jax.numpy as jnp
from jax.experimental import pallas as pl
from jax.experimental.pallas import tpu as pltpu

_EPS = 1e-7


def _cdiv(a, b):
    return -(-a // b)


def _canny_partial_kernel(a_ref, b_ref, out_ref, *, batch):
    """One grid step == one batch tile of `bt` images (scale-free).

    a_ref, b_ref : VMEM (bt, H, W) f32 -- UNSCALED image tiles
    out_ref      : VMEM (1, 8, 128) f32 -- lane-packed per-block statistics:
                   lane 0: sum(eA0^2)    lane 1: sum(eB0^2)
                   lane 2: sum(eA0*eB0)  lane 3: sum((eA0-eB0)^2)
                   lane 4: max(A tile)   lane 5: max(B tile)   (rest: 0)
    """
    bt, H, W = a_ref.shape
    f32 = jnp.float32

    # Ragged-batch mask -- only traced in when bt does not divide the batch.
    ragged = (batch % bt) != 0
    if ragged:
        base = pl.program_id(0) * bt
        bidx = jax.lax.broadcasted_iota(jnp.int32, (bt, H, W), 0)
        valid = (bidx + base) < batch
    else:
        valid = None

    zrow = jnp.zeros((bt, 1, W), f32)
    zcol = jnp.zeros((bt, H, 1), f32)

    def edge_mag(ref):
        x = ref[...].astype(f32)
        if valid is not None:
            x = jnp.where(valid, x, 0.0)
        # Separable Sobel (cross-correlation) with zero halo, all in the value
        # (vreg) domain: every shift is a concat of a zero row/column with a
        # static slice -> no scratch stores and no zero-fill passes.
        xm1 = jnp.concatenate([zrow, x[:, :H - 1, :]], axis=1)   # x[i-1, j]
        xp1 = jnp.concatenate([x[:, 1:, :], zrow], axis=1)       # x[i+1, j]
        cs = xm1 + 2.0 * x + xp1                                 # [1,2,1] smooth along rows
        rd = xp1 - xm1                                           # central difference along rows
        csl = jnp.concatenate([cs[:, :, 1:], zcol], axis=2)      # cs[i, j+1]
        csr = jnp.concatenate([zcol, cs[:, :, :W - 1]], axis=2)  # cs[i, j-1]
        gx = csl - csr
        rdl = jnp.concatenate([rd[:, :, 1:], zcol], axis=2)      # rd[i, j+1]
        rdr = jnp.concatenate([zcol, rd[:, :, :W - 1]], axis=2)  # rd[i, j-1]
        gy = rdr + 2.0 * rd + rdl
        e = jnp.sqrt(gx * gx + gy * gy + jnp.float32(_EPS))
        if valid is not None:
            e = jnp.where(valid, e, 0.0)
        return e, jnp.max(x)

    ea, max_a = edge_mag(a_ref)
    eb, max_b = edge_mag(b_ref)
    d = ea - eb

    # NOTE: plain f32 block reductions; for very large tiles consider per-row
    # partial sums / compensated accumulation.
    s_aa = jnp.sum(ea * ea)
    s_bb = jnp.sum(eb * eb)
    s_ab = jnp.sum(ea * eb)
    s_dd = jnp.sum(d * d)

    # Lane-packed, unmasked full-block store; wrapper reads [:, 0, 0:6].
    lane = jax.lax.broadcasted_iota(jnp.int32, out_ref.shape, 2)
    packed = jnp.where(lane == 0, s_aa,
             jnp.where(lane == 1, s_bb,
             jnp.where(lane == 2, s_ab,
             jnp.where(lane == 3, s_dd,
             jnp.where(lane == 4, max_a,
             jnp.where(lane == 5, max_b, 0.0))))))
    out_ref[...] = packed.astype(f32)


def _vmem_budget():
    """Generation-aware (physical-VMEM-derived) working-set budget and limit."""
    try:
        cap = int(pltpu.get_tpu_info().vmem_capacity_bytes)
    except Exception:
        cap = 64 * 1024 * 1024  # conservative fallback (v7x-sized)
    budget = min(cap // 2, 64 * 1024 * 1024)        # working-set target
    limit = min((cap * 3) // 4, 96 * 1024 * 1024)   # scoped VMEM limit
    return budget, limit


def _pick_batch_tile(B, H, W, budget_bytes):
    """Largest batch tile whose layout-aware VMEM working set fits the budget."""
    lanes = _cdiv(W, 128) * 128      # lane-rounded width (a W=16 image still occupies 128 lanes)
    sublanes = _cdiv(H, 8) * 8       # sublane-rounded height
    img_tile_bytes = 4 * sublanes * lanes
    # 2 inputs x 2 pipeline buffers, plus ~8 image-sized live value temporaries.
    per_img = img_tile_bytes * (2 * 2 + 8)
    return max(1, min(B, budget_bytes // per_img))


def canny_edge_loss(image_a, image_b, low_threshold=0.1, high_threshold=0.3,
                    *, scales=None):
    """Pallas TPU implementation of CannyEdgeLoss.forward.

    image_a, image_b: (B, 1, H, W) arrays (NCHW, single channel, as required by
    the (1,1,3,3) Sobel conv weights in the reference module).
    scales: optional (scale_a, scale_b) overriding the data-dependent
    "if image.max() > 1: image /= 2" branch (0.5 or 1.0 each).
    Returns a scalar float32 loss.
    """
    # Thresholds are stored by the torch module but unused in its forward.
    del low_threshold, high_threshold

    B, C, H, W = image_a.shape
    assert image_b.shape == image_a.shape
    assert C == 1, "F.conv2d with a (1,1,3,3) kernel requires a single input channel"

    a = image_a.reshape(B, H, W).astype(jnp.float32)
    b = image_b.reshape(B, H, W).astype(jnp.float32)

    budget, vmem_limit = _vmem_budget()
    bt = _pick_batch_tile(B, H, W, budget)
    if _cdiv(B, bt) < 2 and B >= 2:
        # Keep >= 2 grid steps so v7x's 2 TensorCores both get work.
        bt = _cdiv(B, 2)
    num_blocks = _cdiv(B, bt)
    # TODO(synk): for B == 1 (or H*W*4 approaching the VMEM budget) add a second,
    # row-tiled grid axis with a 1-row overlapping halo so a single image need not
    # fit in VMEM per step and both v7x TensorCores stay busy.

    partials = pl.pallas_call(
        functools.partial(_canny_partial_kernel, batch=B),
        out_shape=jax.ShapeDtypeStruct((num_blocks, 8, 128), jnp.float32),
        grid=(num_blocks,),
        in_specs=[
            pl.BlockSpec((bt, H, W), lambda i: (i, 0, 0)),   # image A tile
            pl.BlockSpec((bt, H, W), lambda i: (i, 0, 0)),   # image B tile
        ],
        out_specs=pl.BlockSpec((1, 8, 128), lambda i: (i, 0, 0)),
        compiler_params=pltpu.CompilerParams(
            dimension_semantics=("parallel",),
            vmem_limit_bytes=int(vmem_limit)),
    )(a, b)

    stats = partials[:, 0, :]
    s_aa = jnp.sum(stats[:, 0])
    s_bb = jnp.sum(stats[:, 1])
    s_ab = jnp.sum(stats[:, 2])
    s_dd = jnp.sum(stats[:, 3])

    if scales is None:
        sa = jnp.where(jnp.max(stats[:, 4]) > 1.0, 0.5, 1.0)
        sb = jnp.where(jnp.max(stats[:, 5]) > 1.0, 0.5, 1.0)
    else:
        sa = jnp.asarray(scales[0], jnp.float32)
        sb = jnp.asarray(scales[1], jnp.float32)

    # Edge magnitudes are (eps-approximately) scale homogeneous, so the scaled
    # Frobenius norm is recovered from scale-free partials:
    #   ||sa*eA0 - sb*eB0||^2 = sa^2*SA + sb^2*SB - 2*sa*sb*SAB
    # The equal-scale path uses the directly accumulated sum((eA0-eB0)^2), which
    # is cancellation-free and exact w.r.t. the reference when sa == sb == 1
    # (the common case for inputs already normalized to [0, 1]).
    loss_sq = jnp.where(sa == sb,
                        sa * sa * s_dd,
                        sa * sa * s_aa + sb * sb * s_bb - 2.0 * sa * sb * s_ab)
    return jnp.sqrt(jnp.maximum(loss_sq, 0.0))


def _reference_loss(image_a, image_b):
    """Pure-JAX reference mirroring the PyTorch forward, for validation."""
    kx = jnp.asarray([[-1.0, 0.0, 1.0], [-2.0, 0.0, 2.0], [-1.0, 0.0, 1.0]],
                     jnp.float32).reshape(1, 1, 3, 3)
    ky = jnp.asarray([[-1.0, -2.0, -1.0], [0.0, 0.0, 0.0], [1.0, 2.0, 1.0]],
                     jnp.float32).reshape(1, 1, 3, 3)

    def prep(img):
        img = img.astype(jnp.float32)
        return jnp.where(jnp.max(img) > 1.0, img / 2.0, img)

    def edges(img):
        gx = jax.lax.conv_general_dilated(img, kx, (1, 1), ((1, 1), (1, 1)),
                                          dimension_numbers=("NCHW", "OIHW", "NCHW"))
        gy = jax.lax.conv_general_dilated(img, ky, (1, 1), ((1, 1), (1, 1)),
                                          dimension_numbers=("NCHW", "OIHW", "NCHW"))
        return jnp.sqrt(gx ** 2 + gy ** 2 + _EPS)

    d = edges(prep(image_a)) - edges(prep(image_b))
    return jnp.sqrt(jnp.sum(d * d))


if __name__ == "__main__":
    key = jax.random.PRNGKey(0)
    ka, kb = jax.random.split(key)
    B, C, H, W = 2, 1, 16, 16
    # image_A in [0, 1) (no rescale branch), image_B in [0, 2) (exercises the /2 branch)
    image_a = jax.random.uniform(ka, (B, C, H, W), dtype=jnp.float32)
    image_b = jax.random.uniform(kb, (B, C, H, W), dtype=jnp.float32) * 2.0

    loss = canny_edge_loss(image_a, image_b)
    loss = jax.block_until_ready(loss)

    ref = jax.block_until_ready(_reference_loss(image_a, image_b))
    # Tolerance covers the documented eps-level approximation of the mixed-scale
    # path plus f32 reduction-order differences.
    assert jnp.allclose(loss, ref, rtol=5e-4, atol=1e-4), (loss, ref)

    print("KERNEL_OK")
</pallas_src>

<mosaic_0001>
module attributes {stable_mosaic.version = 11 : i64} {
  func.func @_canny_partial_kernel(%arg0: i32, %arg1: memref<1x16x16xf32, #tpu.memory_space<vmem>>, %arg2: memref<1x16x16xf32, #tpu.memory_space<vmem>>, %arg3: memref<1x8x128xf32, #tpu.memory_space<vmem>>) attributes {dimension_semantics = [#tpu.dimension_semantics<parallel>], iteration_bounds = array<i64: 2>, scalar_prefetch = 0 : i64, scratch_operands = 0 : i64, tpu.core_type = #tpu.core_type<tc>, window_params = [{transform_indices = @transform_0, window_bounds = array<i64: 1, 16, 16>}, {transform_indices = @transform_1, window_bounds = array<i64: 1, 16, 16>}, {transform_indices = @transform_2, window_bounds = array<i64: 1, 8, 128>}]} {
    %cst = arith.constant 0.000000e+00 : f32
    %0 = vector.broadcast %cst : f32 to vector<1x1x16xf32>
    %cst_0 = arith.constant 0.000000e+00 : f32
    %1 = vector.broadcast %cst_0 : f32 to vector<1x16x1xf32>
    %c0 = arith.constant 0 : index
    %c0_1 = arith.constant 0 : index
    %c0_2 = arith.constant 0 : index
    %2 = vector.load %arg1[%c0, %c0_1, %c0_2] : memref<1x16x16xf32, #tpu.memory_space<vmem>>, vector<1x16x16xf32>
    %3 = vector.extract_strided_slice %2 {offsets = [0, 0, 0], sizes = [1, 15, 16], strides = [1, 1, 1]} : vector<1x16x16xf32> to vector<1x15x16xf32>
    %4 = tpu.concatenate %0, %3 in 1 : vector<1x1x16xf32>, vector<1x15x16xf32> -> vector<1x16x16xf32>
    %5 = vector.extract_strided_slice %2 {offsets = [0, 1, 0], sizes = [1, 15, 16], strides = [1, 1, 1]} : vector<1x16x16xf32> to vector<1x15x16xf32>
    %6 = tpu.concatenate %5, %0 in 1 : vector<1x15x16xf32>, vector<1x1x16xf32> -> vector<1x16x16xf32>
    %cst_3 = arith.constant 2.000000e+00 : f32
    %7 = vector.broadcast %cst_3 : f32 to vector<1x16x16xf32>
    %8 = arith.mulf %7, %2 : vector<1x16x16xf32>
    %9 = arith.addf %4, %8 : vector<1x16x16xf32>
    %10 = arith.addf %9, %6 : vector<1x16x16xf32>
    %11 = arith.subf %6, %4 : vector<1x16x16xf32>
    %12 = vector.extract_strided_slice %10 {offsets = [0, 0, 1], sizes = [1, 16, 15], strides = [1, 1, 1]} : vector<1x16x16xf32> to vector<1x16x15xf32>
    %13 = tpu.concatenate %12, %1 in 2 : vector<1x16x15xf32>, vector<1x16x1xf32> -> vector<1x16x16xf32>
    %14 = vector.extract_strided_slice %10 {offsets = [0, 0, 0], sizes = [1, 16, 15], strides = [1, 1, 1]} : vector<1x16x16xf32> to vector<1x16x15xf32>
    %15 = tpu.concatenate %1, %14 in 2 : vector<1x16x1xf32>, vector<1x16x15xf32> -> vector<1x16x16xf32>
    %16 = arith.subf %13, %15 : vector<1x16x16xf32>
    %17 = vector.extract_strided_slice %11 {offsets = [0, 0, 1], sizes = [1, 16, 15], strides = [1, 1, 1]} : vector<1x16x16xf32> to vector<1x16x15xf32>
    %18 = tpu.concatenate %17, %1 in 2 : vector<1x16x15xf32>, vector<1x16x1xf32> -> vector<1x16x16xf32>
    %19 = vector.extract_strided_slice %11 {offsets = [0, 0, 0], sizes = [1, 16, 15], strides = [1, 1, 1]} : vector<1x16x16xf32> to vector<1x16x15xf32>
    %20 = tpu.concatenate %1, %19 in 2 : vector<1x16x1xf32>, vector<1x16x15xf32> -> vector<1x16x16xf32>
    %cst_4 = arith.constant 2.000000e+00 : f32
    %21 = vector.broadcast %cst_4 : f32 to vector<1x16x16xf32>
    %22 = arith.mulf %21, %11 : vector<1x16x16xf32>
    %23 = arith.addf %20, %22 : vector<1x16x16xf32>
    %24 = arith.addf %23, %18 : vector<1x16x16xf32>
    %25 = arith.mulf %16, %16 : vector<1x16x16xf32>
    %26 = arith.mulf %24, %24 : vector<1x16x16xf32>
    %27 = arith.addf %25, %26 : vector<1x16x16xf32>
    %cst_5 = arith.constant 1.000000e-07 : f32
    %28 = vector.broadcast %cst_5 : f32 to vector<1x16x16xf32>
    %29 = arith.addf %27, %28 : vector<1x16x16xf32>
    %30 = math.sqrt %29 : vector<1x16x16xf32>
    %31 = vector.shape_cast %2 : vector<1x16x16xf32> to vector<1x1x16x16xf32>
    %cst_6 = arith.constant dense<0xFF800000> : vector<1xf32>
    %32 = vector.multi_reduction <maximumf>, %31, %cst_6 [1, 2, 3] : vector<1x1x16x16xf32> to vector<1xf32>
    %33 = vector.shape_cast %32 : vector<1xf32> to vector<1x1x1x1xf32>
    %34 = vector.extract %33[0, 0, 0, 0] : f32 from vector<1x1x1x1xf32>
    %c0_7 = arith.constant 0 : index
    %c0_8 = arith.constant 0 : index
    %c0_9 = arith.constant 0 : index
    %35 = vector.load %arg2[%c0_7, %c0_8, %c0_9] : memref<1x16x16xf32, #tpu.memory_space<vmem>>, vector<1x16x16xf32>
    %36 = vector.extract_strided_slice %35 {offsets = [0, 0, 0], sizes = [1, 15, 16], strides = [1, 1, 1]} : vector<1x16x16xf32> to vector<1x15x16xf32>
    %37 = tpu.concatenate %0, %36 in 1 : vector<1x1x16xf32>, vector<1x15x16xf32> -> vector<1x16x16xf32>
    %38 = vector.extract_strided_slice %35 {offsets = [0, 1, 0], sizes = [1, 15, 16], strides = [1, 1, 1]} : vector<1x16x16xf32> to vector<1x15x16xf32>
    %39 = tpu.concatenate %38, %0 in 1 : vector<1x15x16xf32>, vector<1x1x16xf32> -> vector<1x16x16xf32>
    %cst_10 = arith.constant 2.000000e+00 : f32
    %40 = vector.broadcast %cst_10 : f32 to vector<1x16x16xf32>
    %41 = arith.mulf %40, %35 : vector<1x16x16xf32>
    %42 = arith.addf %37, %41 : vector<1x16x16xf32>
    %43 = arith.addf %42, %39 : vector<1x16x16xf32>
    %44 = arith.subf %39, %37 : vector<1x16x16xf32>
    %45 = vector.extract_strided_slice %43 {offsets = [0, 0, 1], sizes = [1, 16, 15], strides = [1, 1, 1]} : vector<1x16x16xf32> to vector<1x16x15xf32>
    %46 = tpu.concatenate %45, %1 in 2 : vector<1x16x15xf32>, vector<1x16x1xf32> -> vector<1x16x16xf32>
    %47 = vector.extract_strided_slice %43 {offsets = [0, 0, 0], sizes = [1, 16, 15], strides = [1, 1, 1]} : vector<1x16x16xf32> to vector<1x16x15xf32>
    %48 = tpu.concatenate %1, %47 in 2 : vector<1x16x1xf32>, vector<1x16x15xf32> -> vector<1x16x16xf32>
    %49 = arith.subf %46, %48 : vector<1x16x16xf32>
    %50 = vector.extract_strided_slice %44 {offsets = [0, 0, 1], sizes = [1, 16, 15], strides = [1, 1, 1]} : vector<1x16x16xf32> to vector<1x16x15xf32>
    %51 = tpu.concatenate %50, %1 in 2 : vector<1x16x15xf32>, vector<1x16x1xf32> -> vector<1x16x16xf32>
    %52 = vector.extract_strided_slice %44 {offsets = [0, 0, 0], sizes = [1, 16, 15], strides = [1, 1, 1]} : vector<1x16x16xf32> to vector<1x16x15xf32>
    %53 = tpu.concatenate %1, %52 in 2 : vector<1x16x1xf32>, vector<1x16x15xf32> -> vector<1x16x16xf32>
    %cst_11 = arith.constant 2.000000e+00 : f32
    %54 = vector.broadcast %cst_11 : f32 to vector<1x16x16xf32>
    %55 = arith.mulf %54, %44 : vector<1x16x16xf32>
    %56 = arith.addf %53, %55 : vector<1x16x16xf32>
    %57 = arith.addf %56, %51 : vector<1x16x16xf32>
    %58 = arith.mulf %49, %49 : vector<1x16x16xf32>
    %59 = arith.mulf %57, %57 : vector<1x16x16xf32>
    %60 = arith.addf %58, %59 : vector<1x16x16xf32>
    %cst_12 = arith.constant 1.000000e-07 : f32
    %61 = vector.broadcast %cst_12 : f32 to vector<1x16x16xf32>
    %62 = arith.addf %60, %61 : vector<1x16x16xf32>
    %63 = math.sqrt %62 : vector<1x16x16xf32>
    %64 = vector.shape_cast %35 : vector<1x16x16xf32> to vector<1x1x16x16xf32>
    %cst_13 = arith.constant dense<0xFF800000> : vector<1xf32>
    %65 = vector.multi_reduction <maximumf>, %64, %cst_13 [1, 2, 3] : vector<1x1x16x16xf32> to vector<1xf32>
    %66 = vector.shape_cast %65 : vector<1xf32> to vector<1x1x1x1xf32>
    %67 = vector.extract %66[0, 0, 0, 0] : f32 from vector<1x1x1x1xf32>
    %68 = arith.subf %30, %63 : vector<1x16x16xf32>
    %69 = arith.mulf %30, %30 : vector<1x16x16xf32>
    %70 = vector.shape_cast %69 : vector<1x16x16xf32> to vector<1x1x16x16xf32>
    %cst_14 = arith.constant dense<0.000000e+00> : vector<1xf32>
    %71 = vector.multi_reduction <add>, %70, %cst_14 [1, 2, 3] : vector<1x1x16x16xf32> to vector<1xf32>
    %72 = vector.shape_cast %71 : vector<1xf32> to vector<1x1x1x1xf32>
    %73 = vector.extract %72[0, 0, 0, 0] : f32 from vector<1x1x1x1xf32>
    %74 = arith.mulf %63, %63 : vector<1x16x16xf32>
    %75 = vector.shape_cast %74 : vector<1x16x16xf32> to vector<1x1x16x16xf32>
    %cst_15 = arith.constant dense<0.000000e+00> : vector<1xf32>
    %76 = vector.multi_reduction <add>, %75, %cst_15 [1, 2, 3] : vector<1x1x16x16xf32> to vector<1xf32>
    %77 = vector.shape_cast %76 : vector<1xf32> to vector<1x1x1x1xf32>
    %78 = vector.extract %77[0, 0, 0, 0] : f32 from vector<1x1x1x1xf32>
    %79 = arith.mulf %30, %63 : vector<1x16x16xf32>
    %80 = vector.shape_cast %79 : vector<1x16x16xf32> to vector<1x1x16x16xf32>
    %cst_16 = arith.constant dense<0.000000e+00> : vector<1xf32>
    %81 = vector.multi_reduction <add>, %80, %cst_16 [1, 2, 3] : vector<1x1x16x16xf32> to vector<1xf32>
    %82 = vector.shape_cast %81 : vector<1xf32> to vector<1x1x1x1xf32>
    %83 = vector.extract %82[0, 0, 0, 0] : f32 from vector<1x1x1x1xf32>
    %84 = arith.mulf %68, %68 : vector<1x16x16xf32>
    %85 = vector.shape_cast %84 : vector<1x16x16xf32> to vector<1x1x16x16xf32>
    %cst_17 = arith.constant dense<0.000000e+00> : vector<1xf32>
    %86 = vector.multi_reduction <add>, %85, %cst_17 [1, 2, 3] : vector<1x1x16x16xf32> to vector<1xf32>
    %87 = vector.shape_cast %86 : vector<1xf32> to vector<1x1x1x1xf32>
    %88 = vector.extract %87[0, 0, 0, 0] : f32 from vector<1x1x1x1xf32>
    %89 = tpu.iota {dimensions = array<i32: 2>} : vector<1x8x128xi32>
    %c0_i32 = arith.constant 0 : i32
    %90 = vector.broadcast %c0_i32 : i32 to vector<1x8x128xi32>
    %91 = arith.cmpi eq, %89, %90 : vector<1x8x128xi32>
    %c1_i32 = arith.constant 1 : i32
    %92 = vector.broadcast %c1_i32 : i32 to vector<1x8x128xi32>
    %93 = arith.cmpi eq, %89, %92 : vector<1x8x128xi32>
    %c2_i32 = arith.constant 2 : i32
    %94 = vector.broadcast %c2_i32 : i32 to vector<1x8x128xi32>
    %95 = arith.cmpi eq, %89, %94 : vector<1x8x128xi32>
    %c3_i32 = arith.constant 3 : i32
    %96 = vector.broadcast %c3_i32 : i32 to vector<1x8x128xi32>
    %97 = arith.cmpi eq, %89, %96 : vector<1x8x128xi32>
    %c4_i32 = arith.constant 4 : i32
    %98 = vector.broadcast %c4_i32 : i32 to vector<1x8x128xi32>
    %99 = arith.cmpi eq, %89, %98 : vector<1x8x128xi32>
    %c5_i32 = arith.constant 5 : i32
    %100 = vector.broadcast %c5_i32 : i32 to vector<1x8x128xi32>
    %101 = arith.cmpi eq, %89, %100 : vector<1x8x128xi32>
    %cst_18 = arith.constant 0.000000e+00 : f32
    %102 = vector.broadcast %67 : f32 to vector<1x8x128xf32>
    %103 = vector.broadcast %cst_18 : f32 to vector<1x8x128xf32>
    %104 = arith.select %101, %102, %103 : vector<1x8x128xi1>, vector<1x8x128xf32>
    %105 = vector.broadcast %34 : f32 to vector<1x8x128xf32>
    %106 = arith.select %99, %105, %104 : vector<1x8x128xi1>, vector<1x8x128xf32>
    %107 = vector.broadcast %88 : f32 to vector<1x8x128xf32>
    %108 = arith.select %97, %107, %106 : vector<1x8x128xi1>, vector<1x8x128xf32>
    %109 = vector.broadcast %83 : f32 to vector<1x8x128xf32>
    %110 = arith.select %95, %109, %108 : vector<1x8x128xi1>, vector<1x8x128xf32>
    %111 = vector.broadcast %78 : f32 to vector<1x8x128xf32>
    %112 = arith.select %93, %111, %110 : vector<1x8x128xi1>, vector<1x8x128xf32>
    %113 = vector.broadcast %73 : f32 to vector<1x8x128xf32>
    %114 = arith.select %91, %113, %112 : vector<1x8x128xi1>, vector<1x8x128xf32>
    %c0_19 = arith.constant 0 : index
    %c0_20 = arith.constant 0 : index
    %c0_21 = arith.constant 0 : index
    %115 = vector.load %arg3[%c0_19, %c0_20, %c0_21] : memref<1x8x128xf32, #tpu.memory_space<vmem>>, vector<1x8x128xf32>
    tpu.vector_store %arg3[%c0_19, %c0_20, %c0_21], %114 {strides = array<i32>} : memref<1x8x128xf32, #tpu.memory_space<vmem>>, vector<1x8x128xf32>,
    return
  }
  func.func @transform_0(%arg0: i32) -> (i32, i32, i32) {
    %c0_i32 = arith.constant 0 : i32
    %c0_i32_0 = arith.constant 0 : i32
    %c0_i32_1 = arith.constant 0 : i32
    return %arg0, %c0_i32, %c0_i32_0 : i32, i32, i32
  }
  func.func @transform_1(%arg0: i32) -> (i32, i32, i32) {
    %c0_i32 = arith.constant 0 : i32
    %c0_i32_0 = arith.constant 0 : i32
    %c0_i32_1 = arith.constant 0 : i32
    return %arg0, %c0_i32, %c0_i32_0 : i32, i32, i32
  }
  func.func @transform_2(%arg0: i32) -> (i32, i32, i32) {
    %c0_i32 = arith.constant 0 : i32
    %c0_i32_0 = arith.constant 0 : i32
    %c0_i32_1 = arith.constant 0 : i32
    return %arg0, %c0_i32, %c0_i32_0 : i32, i32, i32
  }
}

</mosaic_0001>

<llo_original>
// kernel: tpu_custom_call.1
$region0: #{tpu_custom_call.1}
  #allocation0 [shape = 'u32[]', space=smem, size = 0x4, offset = 0x4, fixed_abs, tag = 'smem constant byte address 0x4 - core index']
  #allocation1 [shape = 'u32[72,128]{1,0:T(1,128)}', space=vmem, size = 0x9000, scoped, tag = 'internal scratch']
  %s0 = inlined_call_operand.hbm [shape: f32[2,16,16], index: 0, kind: input, shape index: {}]
  %s1 = inlined_call_operand.hbm [shape: f32[2,16,16], index: 1, kind: input, shape index: {}]
  %s2 = inlined_call_operand.hbm [shape: f32[2,8,128], index: 2, kind: output, shape index: {}]
  %s3 = sld [smem:[#allocation0]]
  $region49: #{tpu_custom_call.1} parent=0
    _
  %s5 = ssub.s32 1, %s3
  %s6 = scalar_select 0, %s5, %s3
  $region1: #{tpu_custom_call.1} parent=0
    #allocation2 [shape = 'u8[16384]{0}', space=vmem, size = 0x4000, scoped, tag = 'input window, operand 0']
    #allocation3 [shape = 's32[2]{0}', space=sflag, size = 0x8, scoped, tag = 'scoped memory for tpu_custom_call.1']
    #allocation4 [shape = 's32[2]{0}', space=sflag, size = 0x8, scoped, tag = 'scoped memory for tpu_custom_call.1']
    #allocation5 [shape = 'u8[16384]{0}', space=vmem, size = 0x4000, scoped, tag = 'input window, operand 1']
    #allocation6 [shape = 's32[2]{0}', space=sflag, size = 0x8, scoped, tag = 'scoped memory for tpu_custom_call.1']
    #allocation7 [shape = 'u8[8192]{0}', space=vmem, size = 0x2000, scoped, tag = 'output window, operand 0']
    %7 = vsyncpa [#allocation3], 0
    %s8 = scalar_lea.sflag [#allocation3], 1
    %9 = vsyncpa %s8, 0
    %10 = vsyncpa [#allocation6], 0
    %s11 = scalar_lea.sflag [#allocation6], 1
    %12 = vsyncpa %s11, 0
    %13 = vsyncpa [#allocation4], 0
    %s14 = scalar_lea.sflag [#allocation4], 1
    %15 = vsyncpa %s14, 0
    loop: start=0, step=1, limit=4
    $region2: #{tpu_custom_call.1} parent=1 // loop_pre_header
      _
    $region3: #{tpu_custom_call.1} parent=1 // loop_header
      %s17 = sphi 0, %s21
      %p18 = scmp.ge.s32.totalorder %s17, 4
      %s27 = sphi 0, %s29
      %s30 = sphi 0, %s27
      %s31 = sphi 0, %s30
      %s47 = sphi 0, %s31
      %s53 = sphi 0, %s55
      %s56 = sphi 0, %s53
      %s57 = sphi 0, %s56
      %s73 = sphi 0, %s57
      %s79 = sphi 0, %s81
      %s82 = sphi 0, %s79
      %s83 = sphi 0, %s82
      %s99 = sphi 0, %s83
    $region4: #{tpu_custom_call.1} parent=1 // loop_header_branch
      %20 = sbr.rel (%p18) target = $region8
    $region5: #{tpu_custom_call.1} parent=1 // loop_body
      %s22 = ssub.s32 %s17, 1
      %s23 = ssub.s32 %s17, 2
      %s24 = sadd.s32 %s17, 1
      %s25 = ssub.s32 %s17, %s24
      %p26 = scmp.eq.s32.totalorder %s25, 0
      %s28 = sadd.s32 %s27, 1
      %s29 = scalar_select %p26, %s27, %s28
      %p32 = pneg %p26
      %p33 = scmp.eq.s32.totalorder %s17, 1
      %p34 = por %p32, %p33
      %p35 = scmp.ne.s32.totalorder %s27, %s30
      %p36 = scmp.eq.s32.totalorder %s17, 0
      %p37 = por %p35, %p36
      %p38 = scmp.ne.s32.totalorder %s27, %s30
      %p39 = scmp.eq.s32.totalorder %s22, 1
      %p40 = por %p38, %p39
      %p41 = scmp.ne.s32.totalorder %s30, %s31
      %p42 = scmp.eq.s32.totalorder %s22, 0
      %p43 = por %p41, %p42
      %p44 = scmp.ne.s32.totalorder %s30, %s31
      %p45 = scmp.eq.s32.totalorder %s23, 1
      %p46 = por %p44, %p45
      %p48 = scmp.ne.s32.totalorder %s31, %s47
      %p49 = scmp.eq.s32.totalorder %s23, 0
      %p50 = por %p48, %p49
      %s51 = ssub.s32 %s17, %s24
      %p52 = scmp.eq.s32.totalorder %s51, 0
      %s54 = sadd.s32 %s53, 1
      %s55 = scalar_select %p52, %s53, %s54
      %p58 = pneg %p52
      %p59 = scmp.eq.s32.totalorder %s17, 1
      %p60 = por %p58, %p59
      %p61 = scmp.ne.s32.totalorder %s53, %s56
      %p62 = scmp.eq.s32.totalorder %s17, 0
      %p63 = por %p61, %p62
      %p64 = scmp.ne.s32.totalorder %s53, %s56
      %p65 = scmp.eq.s32.totalorder %s22, 1
      %p66 = por %p64, %p65
      %p67 = scmp.ne.s32.totalorder %s56, %s57
      %p68 = scmp.eq.s32.totalorder %s22, 0
      %p69 = por %p67, %p68
      %p70 = scmp.ne.s32.totalorder %s56, %s57
      %p71 = scmp.eq.s32.totalorder %s23, 1
      %p72 = por %p70, %p71
      %p74 = scmp.ne.s32.totalorder %s57, %s73
      %p75 = scmp.eq.s32.totalorder %s23, 0
      %p76 = por %p74, %p75
      %s77 = ssub.s32 %s17, %s24
      %p78 = scmp.eq.s32.totalorder %s77, 0
      %s80 = sadd.s32 %s79, 1
      %s81 = scalar_select %p78, %s79, %s80
      %p84 = pneg %p78
      %p85 = scmp.eq.s32.totalorder %s17, 1
      %p86 = por %p84, %p85
      %p87 = scmp.ne.s32.totalorder %s79, %s82
      %p88 = scmp.eq.s32.totalorder %s17, 0
      %p89 = por %p87, %p88
      %p90 = scmp.ne.s32.totalorder %s79, %s82
      %p91 = scmp.eq.s32.totalorder %s22, 1
      %p92 = por %p90, %p91
      %p93 = scmp.ne.s32.totalorder %s82, %s83
      %p94 = scmp.eq.s32.totalorder %s22, 0
      %p95 = por %p93, %p94
      %p96 = scmp.ne.s32.totalorder %s82, %s83
      %p97 = scmp.eq.s32.totalorder %s23, 1
      %p98 = por %p96, %p97
      %p100 = scmp.ne.s32.totalorder %s83, %s99
      %p101 = scmp.eq.s32.totalorder %s23, 0
      %p102 = por %p100, %p101
      %p103 = scmp.le.s32.totalorder 1, %s17
      %p104 = scmp.lt.s32.totalorder %s17, 3
      %p105 = pnand %p103, %p104
      %p106 = pneg %p105
      // Predicated region
      $region9: #{tpu_custom_call.1} parent=5 // pred_check
        _
      $region10: #{tpu_custom_call.1} parent=5 // pred_check_branch
        %108 = sbr.rel (%p105) target = $region12
      $region11: #{tpu_custom_call.1} parent=5 // pred_region
        %s109 = ssub.s32 %s17, 1
      $region12: #{tpu_custom_call.1} parent=5 // pred_fallthru
        _
      %p110 = scmp.lt.s32.totalorder %s17, 2
      // Predicated region
      $region13: #{tpu_custom_call.1} parent=5 // pred_check
        %p111 = pneg %p110
      $region14: #{tpu_custom_call.1} parent=5 // pred_check_branch
        %113 = sbr.rel (%p111) target = $region16
      $region15: #{tpu_custom_call.1} parent=5 // pred_region
        // Predicated region
        $region17: #{tpu_custom_call.1} parent=15 // pred_check
          %p114 = pneg %p37
        $region18: #{tpu_custom_call.1} parent=15 // pred_check_branch
          %116 = sbr.rel (%p114) target = $region20
        $region19: #{tpu_custom_call.1} parent=15 // pred_region
          %s117 = sand.u32 %s27, 1
          %s118 = scalar_lea.sflag [#allocation3], %s117
          %s119 = sand.u32 %s27, 1
          %s120 = smul.addr %s119, 16
          %s121 = scalar_lea.vmem [#allocation2], %s120
          %123 = vsyncadd %s118, 0
          %s124 = smul.addr %s17, 2
          %s125 = smul.addr %s124, 8
          %s126 = scalar_lea.hbm %s0, %s125
          %s127 = sshll.u32 %s126, 4
          %s128 = int_to_ptr.hbm [resolvable:$true] %s127
          %s129 = sshll.u32 %s121, 4
          %s130 = int_to_ptr.vmem [resolvable:$true] %s129
          %135 = dma.hbm_to_vmem [thread:$0]  %s128, 256, %s130, %s118, 128, 128, 8
        $region20: #{tpu_custom_call.1} parent=15 // pred_fallthru
          _
        // Predicated region
        $region21: #{tpu_custom_call.1} parent=15 // pred_check
          %p136 = pneg %p63
        $region22: #{tpu_custom_call.1} parent=15 // pred_check_branch
          %138 = sbr.rel (%p136) target = $region24
        $region23: #{tpu_custom_call.1} parent=15 // pred_region
          %s139 = sand.u32 %s53, 1
          %s140 = scalar_lea.sflag [#allocation6], %s139
          %s141 = sand.u32 %s53, 1
          %s142 = smul.addr %s141, 16
          %s143 = scalar_lea.vmem [#allocation5], %s142
          %145 = vsyncadd %s140, 0
          %s146 = smul.addr %s17, 2
          %s147 = smul.addr %s146, 8
          %s148 = scalar_lea.hbm %s1, %s147
          %s149 = sshll.u32 %s148, 4
          %s150 = int_to_ptr.hbm [resolvable:$true] %s149
          %s151 = sshll.u32 %s143, 4
          %s152 = int_to_ptr.vmem [resolvable:$true] %s151
          %157 = dma.hbm_to_vmem [thread:$0]  %s150, 256, %s152, %s140, 128, 128, 8
        $region24: #{tpu_custom_call.1} parent=15 // pred_fallthru
          _
      $region16: #{tpu_custom_call.1} parent=5 // pred_fallthru
        _
      %p158 = scmp.le.s32.totalorder 1, %s17
      %p159 = scmp.lt.s32.totalorder %s17, 3
      %p160 = pnand %p158, %p159
      %p161 = pneg %p160
      // Predicated region
      $region25: #{tpu_custom_call.1} parent=5 // pred_check
        _
      $region26: #{tpu_custom_call.1} parent=5 // pred_check_branch
        %163 = sbr.rel (%p160) target = $region28
      $region27: #{tpu_custom_call.1} parent=5 // pred_region
        %s164 = ssub.s32 %s17, 1
        %s165 = sand.u32 %s30, 1
        %s166 = scalar_lea.sflag [#allocation3], %s165
        %s167 = sand.u32 %s30, 1
        %s168 = smul.addr %s167, 16
        %s169 = scalar_lea.vmem [#allocation2], %s168
        // Predicated region
        $region29: #{tpu_custom_call.1} parent=27 // pred_check
          %p170 = pneg %p43
        $region30: #{tpu_custom_call.1} parent=27 // pred_check_branch
          %172 = sbr.rel (%p170) target = $region32
        $region31: #{tpu_custom_call.1} parent=27 // pred_region
          %174 = dma.done %s166, 256
        $region32: #{tpu_custom_call.1} parent=27 // pred_fallthru
          _
        %s175 = sand.u32 %s56, 1
        %s176 = scalar_lea.sflag [#allocation6], %s175
        %s177 = sand.u32 %s56, 1
        %s178 = smul.addr %s177, 16
        %s179 = scalar_lea.vmem [#allocation5], %s178
        // Predicated region
        $region33: #{tpu_custom_call.1} parent=27 // pred_check
          %p180 = pneg %p69
        $region34: #{tpu_custom_call.1} parent=27 // pred_check_branch
          %182 = sbr.rel (%p180) target = $region36
        $region35: #{tpu_custom_call.1} parent=27 // pred_region
          %184 = dma.done %s176, 256
        $region36: #{tpu_custom_call.1} parent=27 // pred_fallthru
          _
        %s185 = sand.u32 %s30, 1
        %s186 = scalar_lea.sflag [#allocation3], %s185
        %s187 = sand.u32 %s30, 1
        %s188 = smul.addr %s187, 16
        %s189 = scalar_lea.vmem [#allocation2], %s188
        %p190 = pneg %p43
        %p191 = pneg %p40
        %s192 = sand.u32 %s56, 1
        %s193 = scalar_lea.sflag [#allocation6], %s192
        %s194 = sand.u32 %s56, 1
        %s195 = smul.addr %s194, 16
        %s196 = scalar_lea.vmem [#allocation5], %s195
        %p197 = pneg %p69
        %p198 = pneg %p66
        %p199 = pneg %p95
        %p200 = pneg %p92
        %s201 = sand.u32 %s82, 1
        %s202 = scalar_lea.sflag [#allocation4], %s201
        %s203 = sand.u32 %s82, 1
        %s204 = smul.addr %s203, 8
        %s205 = scalar_lea.vmem [#allocation7], %s204
        %v206 = vld [vmem:[%s169] sm:$0xff]
        %v207 = vld [vmem:[%s169 + $0x8] sm:$0xff]
        %vm210 = vcmask 1040384
        %v211 = vrot.slane %v206, 7
        %v212 = vrot.slane %v207, 7
        %v213 = vsel %vm210, %v211, %v212
        %v216 = vsel %vm210, 0.0, %v211
        %vm217 = vcmask 1046528
        %v218 = vrot.slane %v206, 1
        %v219 = vrot.slane %v207, 1
        %v220 = vsel %vm217, %v218, %v219
        %v223 = vsel %vm217, %v219, 0.0
        %v224 = vmul.f32 %v206, 2.0
        %v225 = vmul.f32 %v207, 2.0
        %v226 = vadd.f32 %v216, %v224
        %v227 = vadd.f32 %v213, %v225
        %v228 = vadd.f32 %v226, %v220
        %v229 = vadd.f32 %v227, %v223
        %v230 = vsub.f32 %v220, %v216
        %v231 = vsub.f32 %v223, %v213
        %234 = vrot.lane.b32.xlu0 %v228, 127
        %v235 = vpop.permute.xlu0 %234
        %236 = vrot.lane.b32.xlu0 %v229, 127
        %v237 = vpop.permute.xlu0 %236
        %vm240 = vcmask 121856
        %v241 = vsel %vm240, %v235, 0.0
        %v242 = vsel %vm240, %v237, 0.0
        %243 = vrot.lane.b32.xlu0 %v228, 1
        %v244 = vpop.permute.xlu0 %243
        %245 = vrot.lane.b32.xlu0 %v229, 1
        %v246 = vpop.permute.xlu0 %245
        %vm249 = vcmask 7168
        %v250 = vsel %vm249, 0.0, %v244
        %v251 = vsel %vm249, 0.0, %v246
        %v252 = vsub.f32 %v241, %v250
        %v253 = vsub.f32 %v242, %v251
        %256 = vrot.lane.b32.xlu0 %v230, 127
        %v257 = vpop.permute.xlu0 %256
        %258 = vrot.lane.b32.xlu0 %v231, 127
        %v259 = vpop.permute.xlu0 %258
        %v262 = vsel %vm240, %v257, 0.0
        %v263 = vsel %vm240, %v259, 0.0
        %264 = vrot.lane.b32.xlu0 %v230, 1
        %v265 = vpop.permute.xlu0 %264
        %266 = vrot.lane.b32.xlu0 %v231, 1
        %v267 = vpop.permute.xlu0 %266
        %v270 = vsel %vm249, 0.0, %v265
        %v271 = vsel %vm249, 0.0, %v267
        %v272 = vmul.f32 %v230, 2.0
        %v273 = vmul.f32 %v231, 2.0
        %v274 = vadd.f32 %v270, %v272
        %v275 = vadd.f32 %v271, %v273
        %v276 = vadd.f32 %v274, %v262
        %v277 = vadd.f32 %v275, %v263
        %v278 = vmul.f32 %v252, %v252
        %v279 = vmul.f32 %v253, %v253
        %v280 = vmul.f32 %v276, %v276
        %v281 = vmul.f32 %v277, %v277
        %v282 = vadd.f32 %v278, %v280
        %v283 = vadd.f32 %v279, %v281
        %v284 = vadd.f32 %v282, 1e-07
        %v285 = vadd.f32 %v283, 1e-07
        %v286 = vrsqrt.pop %v284
        %v287 = vmul.f32 %v286, %v284
        %v288 = vmul.f32 %v287, %v286
        %v289 = vmul.f32 0.5, %v288
        %v290 = vsub.f32 1.5, %v289
        %v291 = vmul.f32 %v286, %v290
        %v292 = vmul.f32 %v284, %v291
        %vm293 = vcmp.eq.f32.partialorder %v284, inf
        %v294 = vsel %vm293, %v284, %v292
        %vm295 = vcmp.eq.f32.partialorder %v284, 0.0
        %v296 = vand.u32 %v284, 2147483648
        %v297 = vsel %vm295, %v296, %v294
        %v298 = vrsqrt.pop %v285
        %v299 = vmul.f32 %v298, %v285
        %v300 = vmul.f32 %v299, %v298
        %v301 = vmul.f32 0.5, %v300
        %v302 = vsub.f32 1.5, %v301
        %v303 = vmul.f32 %v298, %v302
        %v304 = vmul.f32 %v285, %v303
        %vm305 = vcmp.eq.f32.partialorder %v285, inf
        %v306 = vsel %vm305, %v285, %v304
        %vm307 = vcmp.eq.f32.partialorder %v285, 0.0
        %v308 = vand.u32 %v285, 2147483648
        %v309 = vsel %vm307, %v308, %v306
        %vm310 = vcmask 130048
        %v311 = vsel %vm310, %v206, -inf
        %v312 = vsel %vm310, %v207, -inf
        %v313 = vmax.f32 %v311, %v312
        %314 = vmax.xlane.f32.xlu0 %v313
        %v315 = vpop.xlane.xlu0 %314
        %v316 = vrot.slane %v315, 4
        %v317 = vmax.f32 %v315, %v316
        %v318 = vrot.slane %v317, 2
        %v319 = vmax.f32 %v317, %v318
        %v320 = vrot.slane %v319, 1
        %v321 = vmax.f32 %v319, %v320
        %s322 = vtos %v321
        %v323 = vld [vmem:[%s179] sm:$0xff]
        %v324 = vld [vmem:[%s179 + $0x8] sm:$0xff]
        %v327 = vrot.slane %v323, 7
        %v328 = vrot.slane %v324, 7
        %v329 = vsel %vm210, %v327, %v328
        %v332 = vsel %vm210, 0.0, %v327
        %v333 = vrot.slane %v323, 1
        %v334 = vrot.slane %v324, 1
        %v335 = vsel %vm217, %v333, %v334
        %v338 = vsel %vm217, %v334, 0.0
        %v339 = vmul.f32 %v323, 2.0
        %v340 = vmul.f32 %v324, 2.0
        %v341 = vadd.f32 %v332, %v339
        %v342 = vadd.f32 %v329, %v340
        %v343 = vadd.f32 %v341, %v335
        %v344 = vadd.f32 %v342, %v338
        %v345 = vsub.f32 %v335, %v332
        %v346 = vsub.f32 %v338, %v329
        %349 = vrot.lane.b32.xlu0 %v343, 127
        %v350 = vpop.permute.xlu0 %349
        %351 = vrot.lane.b32.xlu0 %v344, 127
        %v352 = vpop.permute.xlu0 %351
        %v355 = vsel %vm240, %v350, 0.0
        %v356 = vsel %vm240, %v352, 0.0
        %357 = vrot.lane.b32.xlu0 %v343, 1
        %v358 = vpop.permute.xlu0 %357
        %359 = vrot.lane.b32.xlu0 %v344, 1
        %v360 = vpop.permute.xlu0 %359
        %v363 = vsel %vm249, 0.0, %v358
        %v364 = vsel %vm249, 0.0, %v360
        %v365 = vsub.f32 %v355, %v363
        %v366 = vsub.f32 %v356, %v364
        %369 = vrot.lane.b32.xlu0 %v345, 127
        %v370 = vpop.permute.xlu0 %369
        %371 = vrot.lane.b32.xlu0 %v346, 127
        %v372 = vpop.permute.xlu0 %371
        %v375 = vsel %vm240, %v370, 0.0
        %v376 = vsel %vm240, %v372, 0.0
        %377 = vrot.lane.b32.xlu0 %v345, 1
        %v378 = vpop.permute.xlu0 %377
        %379 = vrot.lane.b32.xlu0 %v346, 1
        %v380 = vpop.permute.xlu0 %379
        %v383 = vsel %vm249, 0.0, %v378
        %v384 = vsel %vm249, 0.0, %v380
        %v385 = vmul.f32 %v345, 2.0
        %v386 = vmul.f32 %v346, 2.0
        %v387 = vadd.f32 %v383, %v385
        %v388 = vadd.f32 %v384, %v386
        %v389 = vadd.f32 %v387, %v375
        %v390 = vadd.f32 %v388, %v376
        %v391 = vmul.f32 %v365, %v365
        %v392 = vmul.f32 %v366, %v366
        %v393 = vmul.f32 %v389, %v389
        %v394 = vmul.f32 %v390, %v390
        %v395 = vadd.f32 %v391, %v393
        %v396 = vadd.f32 %v392, %v394
        %v397 = vadd.f32 %v395, 1e-07
        %v398 = vadd.f32 %v396, 1e-07
        %v399 = vrsqrt.pop %v397
        %v400 = vmul.f32 %v399, %v397
        %v401 = vmul.f32 %v400, %v399
        %v402 = vmul.f32 0.5, %v401
        %v403 = vsub.f32 1.5, %v402
        %v404 = vmul.f32 %v399, %v403
        %v405 = vmul.f32 %v397, %v404
        %vm406 = vcmp.eq.f32.partialorder %v397, inf
        %v407 = vsel %vm406, %v397, %v405
        %vm408 = vcmp.eq.f32.partialorder %v397, 0.0
        %v409 = vand.u32 %v397, 2147483648
        %v410 = vsel %vm408, %v409, %v407
        %v411 = vrsqrt.pop %v398
        %v412 = vmul.f32 %v411, %v398
        %v413 = vmul.f32 %v412, %v411
        %v414 = vmul.f32 0.5, %v413
        %v415 = vsub.f32 1.5, %v414
        %v416 = vmul.f32 %v411, %v415
        %v417 = vmul.f32 %v398, %v416
        %vm418 = vcmp.eq.f32.partialorder %v398, inf
        %v419 = vsel %vm418, %v398, %v417
        %vm420 = vcmp.eq.f32.partialorder %v398, 0.0
        %v421 = vand.u32 %v398, 2147483648
        %v422 = vsel %vm420, %v421, %v419
        %v423 = vsel %vm310, %v323, -inf
        %v424 = vsel %vm310, %v324, -inf
        %v425 = vmax.f32 %v423, %v424
        %426 = vmax.xlane.f32.xlu0 %v425
        %v427 = vpop.xlane.xlu0 %426
        %v428 = vrot.slane %v427, 4
        %v429 = vmax.f32 %v427, %v428
        %v430 = vrot.slane %v429, 2
        %v431 = vmax.f32 %v429, %v430
        %v432 = vrot.slane %v431, 1
        %v433 = vmax.f32 %v431, %v432
        %s434 = vtos %v433
        %v435 = vsub.f32 %v297, %v410
        %v436 = vsub.f32 %v309, %v422
        %v437 = vmul.f32 %v297, %v297
        %v438 = vmul.f32 %v309, %v309
        %v439 = vsel %vm310, %v437, 0.0
        %v440 = vsel %vm310, %v438, 0.0
        %v441 = vadd.f32 %v439, %v440
        %442 = vadd.xlane.f32.xlu0 %v441
        %v443 = vpop.xlane.xlu0 %442
        %v444 = vrot.slane %v443, 4
        %v445 = vadd.f32 %v443, %v444
        %v446 = vrot.slane %v445, 2
        %v447 = vadd.f32 %v445, %v446
        %v448 = vrot.slane %v447, 1
        %v449 = vadd.f32 %v447, %v448
        %s450 = vtos %v449
        %v451 = vmul.f32 %v410, %v410
        %v452 = vmul.f32 %v422, %v422
        %v453 = vsel %vm310, %v451, 0.0
        %v454 = vsel %vm310, %v452, 0.0
        %v455 = vadd.f32 %v453, %v454
        %456 = vadd.xlane.f32.xlu0 %v455
        %v457 = vpop.xlane.xlu0 %456
        %v458 = vrot.slane %v457, 4
        %v459 = vadd.f32 %v457, %v458
        %v460 = vrot.slane %v459, 2
        %v461 = vadd.f32 %v459, %v460
        %v462 = vrot.slane %v461, 1
        %v463 = vadd.f32 %v461, %v462
        %s464 = vtos %v463
        %v465 = vmul.f32 %v297, %v410
        %v466 = vmul.f32 %v309, %v422
        %v467 = vsel %vm310, %v465, 0.0
        %v468 = vsel %vm310, %v466, 0.0
        %v469 = vadd.f32 %v467, %v468
        %470 = vadd.xlane.f32.xlu0 %v469
        %v471 = vpop.xlane.xlu0 %470
        %v472 = vrot.slane %v471, 4
        %v473 = vadd.f32 %v471, %v472
        %v474 = vrot.slane %v473, 2
        %v475 = vadd.f32 %v473, %v474
        %v476 = vrot.slane %v475, 1
        %v477 = vadd.f32 %v475, %v476
        %s478 = vtos %v477
        %v479 = vmul.f32 %v435, %v435
        %v480 = vmul.f32 %v436, %v436
        %v481 = vsel %vm310, %v479, 0.0
        %v482 = vsel %vm310, %v480, 0.0
        %v483 = vadd.f32 %v481, %v482
        %484 = vadd.xlane.f32.xlu0 %v483
        %v485 = vpop.xlane.xlu0 %484
        %v486 = vrot.slane %v485, 4
        %v487 = vadd.f32 %v485, %v486
        %v488 = vrot.slane %v487, 2
        %v489 = vadd.f32 %v487, %v488
        %v490 = vrot.slane %v489, 1
        %v491 = vadd.f32 %v489, %v490
        %s492 = vtos %v491
        %v493 = vlaneseq
        %v494 = vand.u32 %v493, 127
        %vm495 = vcmp.eq.s32.totalorder %v494, 0
        %vm496 = vcmp.eq.s32.totalorder %v494, 1
        %vm497 = vcmp.eq.s32.totalorder %v494, 2
        %vm498 = vcmp.eq.s32.totalorder %v494, 3
        %vm499 = vcmp.eq.s32.totalorder %v494, 4
        %vm500 = vcmp.eq.s32.totalorder %v494, 5
        %v501 = vstv %s434
        %v502 = vsel %vm500, %v501, 0.0
        %v503 = vstv %s322
        %v504 = vsel %vm499, %v503, %v502
        %v505 = vstv %s492
        %v506 = vsel %vm498, %v505, %v504
        %v507 = vstv %s478
        %v508 = vsel %vm497, %v507, %v506
        %v509 = vstv %s464
        %v510 = vsel %vm496, %v509, %v508
        %v511 = vstv %s450
        %v512 = vsel %vm495, %v511, %v510
        %513 = vst [vmem:[%s205] sm:$0xff] %v512
        %s514 = sand.u32 %s82, 1
        %s515 = scalar_lea.sflag [#allocation4], %s514
        %s516 = sand.u32 %s82, 1
        %s517 = smul.addr %s516, 8
        %s518 = scalar_lea.vmem [#allocation7], %s517
        // Predicated region
        $region37: #{tpu_custom_call.1} parent=27 // pred_check
          %p519 = pneg %p92
        $region38: #{tpu_custom_call.1} parent=27 // pred_check_branch
          %521 = sbr.rel (%p519) target = $region40
        $region39: #{tpu_custom_call.1} parent=27 // pred_region
          %523 = vsyncadd %s515, 0
          %s524 = smul.addr %s22, 8
          %s525 = scalar_lea.hbm %s2, %s524
          %s527 = sshll.u32 %s518, 4
          %s528 = int_to_ptr.vmem [resolvable:$true] %s527
          %s529 = sshll.u32 %s525, 4
          %s530 = int_to_ptr.hbm [resolvable:$true] %s529
          %532 = dma.vmem_to_hbm [thread:$0]  %s528, 128, %s530, %s515
        $region40: #{tpu_custom_call.1} parent=27 // pred_fallthru
          _
      $region28: #{tpu_custom_call.1} parent=5 // pred_fallthru
        _
      %p533 = scmp.le.s32.totalorder 2, %s17
      // Predicated region
      $region41: #{tpu_custom_call.1} parent=5 // pred_check
        %p534 = pneg %p533
      $region42: #{tpu_custom_call.1} parent=5 // pred_check_branch
        %536 = sbr.rel (%p534) target = $region44
      $region43: #{tpu_custom_call.1} parent=5 // pred_region
        %s537 = ssub.s32 %s17, 2
        // Predicated region
        $region45: #{tpu_custom_call.1} parent=43 // pred_check
          %p538 = pneg %p98
        $region46: #{tpu_custom_call.1} parent=43 // pred_check_branch
          %540 = sbr.rel (%p538) target = $region48
        $region47: #{tpu_custom_call.1} parent=43 // pred_region
          %s541 = sand.u32 %s83, 1
          %s542 = scalar_lea.sflag [#allocation4], %s541
          %s543 = sand.u32 %s83, 1
          %s544 = smul.addr %s543, 8
          %s545 = scalar_lea.vmem [#allocation7], %s544
          %547 = dma.done %s542, 128
        $region48: #{tpu_custom_call.1} parent=43 // pred_fallthru
          _
      $region44: #{tpu_custom_call.1} parent=5 // pred_fallthru
        _
    $region6: #{tpu_custom_call.1} parent=1 // loop_footer
      %s21 = sadd.s32 1, %s17
    $region7: #{tpu_custom_call.1} parent=1 // loop_footer_branch
      %16 = sbr.rel target = $region3
    $region8: #{tpu_custom_call.1} parent=1 // loop_exit
      _
    %548 = vsyncpa [#allocation3], 1
    %s549 = scalar_lea.sflag [#allocation3], 1
    %550 = vsyncpa %s549, 1
    %551 = vsyncpa [#allocation6], 1
    %s552 = scalar_lea.sflag [#allocation6], 1
    %553 = vsyncpa %s552, 1
    %554 = vsyncpa [#allocation4], 1
    %s555 = scalar_lea.sflag [#allocation4], 1
    %556 = vsyncpa %s555, 1

</llo_original>
